<compile_context>
chip_gen: v5e
topology: v5e:2x2
jax: 0.10.0
libtpu: 0.0.40
codegen_flags: <defaults>
</compile_context>

<pallas_src>
import math
from typing import NamedTuple, Optional

import jax
import jax.numpy as jnp
from jax.experimental import pallas as pl
from jax.experimental.pallas import tpu as pltpu

LANE = 128
_MIB = 1024 * 1024


def _round_up(v, m):
    return ((v + m - 1) // m) * m


def _cdiv(a, b):
    return (a + b - 1) // b


def _vmem_budget():
    """~85% of physical VMEM: headroom for compiler scratch / semaphores."""
    try:
        cap = int(pltpu.get_tpu_info().vmem_capacity_bytes)
    except Exception:
        cap = 64 * _MIB  # conservative fallback (v7x-sized)
    return int(cap * 0.85)


class MLPParams(NamedTuple):
    w1: jax.Array      # (in_size, mid_p), compute dtype
    b1: jax.Array      # (1, mid_p), float32
    w2: jax.Array      # (mid_p, out_p), compute dtype
    b2: jax.Array      # (1, out_p), float32
    in_size: int
    out_size: int
    mid_p: int
    out_p: int
    tile_mid: int


def prepare_mlp_weights(w1, b1, w2, b2, compute_dtype=None):
    """One-time pad + cast of MLP weights (hoisted out of the forward path).

    Weights are stored transposed vs. nn.Linear: (in_features, out_features).
    compute_dtype: optional MXU input dtype -- jnp.bfloat16 runs the MXU at
    full rate on v5e, v6e and v7x and halves weight HBM/VMEM traffic;
    accumulation, bias and ReLU stay float32 inside the kernel.

    Zero-padding the mid/out feature dims (zero weight rows/columns + zero
    bias) is exact through ReLU and the second matmul.
    """
    in_size, mid_size = w1.shape
    out_size = w2.shape[1]
    w_dtype = (jnp.dtype(compute_dtype) if compute_dtype is not None
               else jnp.dtype(w1.dtype))
    wi = w_dtype.itemsize

    budget = _vmem_budget()
    out_p = _round_up(out_size, LANE)
    mid128 = _round_up(mid_size, LANE)
    in_sub = _round_up(in_size, 8)

    # Keep the full mid dim resident (single-buffered, grid-invariant) when it
    # uses at most ~40% of VMEM; otherwise stream 512-wide mid chunks (multiple
    # of 256 keeps MXU passes full on v6e/v7x, and of 128 on v5e).
    resident = (in_sub * mid128 + mid128 * out_p) * wi + 8 * (mid128 + out_p) * 4
    if resident <= 0.4 * budget or mid128 <= 512:
        tile_mid = mid128
    else:
        tile_mid = 512
        # TODO(synk): for out_p in the many-thousands, also tile the output (N)
        # dimension; currently only mid (K) is streamed.
    mid_p = _round_up(mid_size, tile_mid)

    w1p = jnp.pad(w1, ((0, 0), (0, mid_p - mid_size))).astype(w_dtype)
    w2p = jnp.pad(w2, ((0, mid_p - mid_size), (0, out_p - out_size))).astype(w_dtype)
    b1p = jnp.pad(b1, (0, mid_p - mid_size)).reshape(1, mid_p).astype(jnp.float32)
    b2p = jnp.pad(b2, (0, out_p - out_size)).reshape(1, out_p).astype(jnp.float32)
    return MLPParams(w1p, b1p, w2p, b2p, in_size, out_size, mid_p, out_p, tile_mid)


def _mlp_kernel(x_ref, w1_ref, b1_ref, w2_ref, b2_ref, o_ref, acc_ref):
    k = pl.program_id(1)

    @pl.when(k == 0)
    def _init():
        acc_ref[...] = jnp.zeros_like(acc_ref)

    # First linear (MXU): cast the activation tile to the weight dtype so bf16
    # weights feed bf16 MXU operands; accumulate in f32.
    x = x_ref[...].astype(w1_ref.dtype)
    h = jnp.dot(x, w1_ref[...], preferred_element_type=jnp.float32)
    # Bias + ReLU in f32 on the VPU (exact for the zero-padded mid columns).
    h = jnp.maximum(h + b1_ref[...], 0.0)
    # Second linear (MXU), accumulated over mid chunks in f32.
    acc_ref[...] += jnp.dot(h.astype(w2_ref.dtype), w2_ref[...],
                            preferred_element_type=jnp.float32)

    @pl.when(k == pl.num_programs(1) - 1)
    def _finalize():
        o_ref[...] = (acc_ref[...] + b2_ref[...]).astype(o_ref.dtype)


def mlp_pallas(x, params: MLPParams):
    """y = relu(x @ W1 + b1) @ W2 + b2, matching PyTorch MLP.forward (eval).

    TODO(synk): train-mode dropout (dropout_r > 0) not implemented.
    """
    in_size, out_size = params.in_size, params.out_size
    mid_p, out_p, tile_mid = params.mid_p, params.out_p, params.tile_mid
    assert x.shape[-1] == in_size
    lead_shape = x.shape[:-1]

    x2d = x.reshape(-1, in_size)
    m = x2d.shape[0]

    xi = jnp.dtype(x.dtype).itemsize
    wi = jnp.dtype(params.w1.dtype).itemsize
    sub = 16 if (xi == 2 or wi == 2) else 8

    num_k = mid_p // tile_mid
    nbuf_w = 1 if num_k == 1 else 2  # grid-invariant weights -> single buffer

    # --- VMEM accounting (no double hedging; in_size lane padding included).
    budget = _vmem_budget()
    in_lane = _round_up(in_size, LANE)
    in_sub = _round_up(in_size, 8)
    fixed_bytes = (nbuf_w * in_sub * tile_mid * wi      # W1 block(s)
                   + nbuf_w * tile_mid * out_p * wi     # W2 block(s)
                   + nbuf_w * 8 * tile_mid * 4          # b1 block(s)
                   + 8 * out_p * 4)                     # b2 (single buffered)
    per_row_bytes = (2 * in_lane * xi                   # x tile (double buffer)
                     + 2 * out_p * xi                   # out tile (double buffer)
                     + out_p * 4                        # f32 accumulator scratch
                     + (tile_mid + out_p) * 4)          # f32 h / y temporaries

    # --- token tile: as large as the remaining VMEM budget allows (<= 1024).
    avail = budget - fixed_bytes
    tile_m = (avail // per_row_bytes) if avail > 0 else sub
    tile_m = (tile_m // sub) * sub
    tile_m = max(sub, min(1024, tile_m, _round_up(m, sub)))
    # Guarantee >= 2 token-grid steps so both v7x TensorCores get work.
    if m > sub and _cdiv(m, tile_m) == 1:
        tile_m = _round_up(_cdiv(m, 2), sub)
    grid = (_cdiv(m, tile_m), num_k)

    footprint = fixed_bytes + tile_m * per_row_bytes
    vmem_limit = int(min(budget, max(footprint + 2 * _MIB, 8 * _MIB)))

    cost = pl.CostEstimate(
        flops=2 * m * (in_size * mid_p + mid_p * out_p),
        transcendentals=0,
        bytes_accessed=(m * in_size * xi + in_size * mid_p * wi
                        + mid_p * out_p * wi + (mid_p + out_p) * 4
                        + m * out_p * xi),
    )

    # Grid-invariant blocks are single-buffered; streamed mid-chunks keep the
    # default double buffering so DMA overlaps the MXU.
    const_mode = pl.Buffered(1)
    stream_mode = None if num_k > 1 else const_mode

    in_specs = [
        pl.BlockSpec((tile_m, in_size), lambda i, k: (i, 0)),             # x
        pl.BlockSpec((in_size, tile_mid), lambda i, k: (0, k),
                     pipeline_mode=stream_mode),                          # W1
        pl.BlockSpec((1, tile_mid), lambda i, k: (0, k),
                     pipeline_mode=stream_mode),                          # b1
        pl.BlockSpec((tile_mid, out_p), lambda i, k: (k, 0),
                     pipeline_mode=stream_mode),                          # W2
        pl.BlockSpec((1, out_p), lambda i, k: (0, 0),
                     pipeline_mode=const_mode),                           # b2
    ]

    out = pl.pallas_call(
        _mlp_kernel,
        out_shape=jax.ShapeDtypeStruct((m, out_p), x.dtype),
        grid_spec=pltpu.PrefetchScalarGridSpec(
            num_scalar_prefetch=0,
            grid=grid,
            in_specs=in_specs,
            out_specs=pl.BlockSpec((tile_m, out_p), lambda i, k: (i, 0)),
            scratch_shapes=[pltpu.VMEM((tile_m, out_p), jnp.float32)],
        ),
        compiler_params=pltpu.CompilerParams(
            dimension_semantics=("parallel", "arbitrary"),
            vmem_limit_bytes=vmem_limit),
        cost_estimate=cost,
    )(x2d, params.w1, params.b1, params.w2, params.b2)

    if out_p != out_size:
        # TODO(synk): for large m, consider returning the padded output (or an
        # unpadded masked-store out_spec) to avoid this extra HBM pass.
        out = out[:, :out_size]
    return out.reshape(*lead_shape, out_size)


def init_mlp_params(key, in_size, mid_size, out_size, dtype=jnp.float32):
    """Deterministic init mimicking nn.Linear default (uniform +/- 1/sqrt(fan_in)).
    Weights stored as (in_features, out_features)."""
    k1, k2, k3, k4 = jax.random.split(key, 4)
    bound1 = 1.0 / math.sqrt(in_size)
    bound2 = 1.0 / math.sqrt(mid_size)
    w1 = jax.random.uniform(k1, (in_size, mid_size), dtype, -bound1, bound1)
    b1 = jax.random.uniform(k2, (mid_size,), dtype, -bound1, bound1)
    w2 = jax.random.uniform(k3, (mid_size, out_size), dtype, -bound2, bound2)
    b2 = jax.random.uniform(k4, (out_size,), dtype, -bound2, bound2)
    return w1, b1, w2, b2


def mlp_reference(x, w1, b1, w2, b2):
    h = jnp.maximum(x @ w1 + b1, 0.0)
    return h @ w2 + b2


if __name__ == "__main__":
    key = jax.random.PRNGKey(0)
    kx, kp = jax.random.split(key)

    batch, seq = 2, 8
    in_size, mid_size, out_size = 32, 64, 32

    x = jax.random.normal(kx, (batch, seq, in_size), jnp.float32)
    w1, b1, w2, b2 = init_mlp_params(kp, in_size, mid_size, out_size)

    y_ref = mlp_reference(x, w1, b1, w2, b2)

    # f32 MXU path (matches the f32 reference tightly). Weights pad/cast once.
    params_f32 = prepare_mlp_weights(w1, b1, w2, b2)
    y = jax.block_until_ready(mlp_pallas(x, params_f32))
    assert y.shape == (batch, seq, out_size)
    assert jnp.allclose(y, y_ref, atol=1e-5, rtol=1e-5)

    # bf16 MXU-input fast path (v5e/v6e/v7x; f32 accumulate, f32 bias/ReLU).
    params_bf16 = prepare_mlp_weights(w1, b1, w2, b2, compute_dtype=jnp.bfloat16)
    y_bf16 = jax.block_until_ready(mlp_pallas(x, params_bf16))
    assert y_bf16.shape == (batch, seq, out_size)
    assert jnp.allclose(y_bf16, y_ref, atol=2e-2, rtol=2e-2)

    print("KERNEL_OK")
</pallas_src>

<mosaic_0001>
module attributes {stable_mosaic.version = 11 : i64} {
  func.func @_mlp_kernel(%arg0: i32, %arg1: i32, %arg2: memref<8x32xf32, #tpu.memory_space<vmem>>, %arg3: memref<32x128xf32, #tpu.memory_space<vmem>>, %arg4: memref<1x128xf32, #tpu.memory_space<vmem>>, %arg5: memref<128x128xf32, #tpu.memory_space<vmem>>, %arg6: memref<1x128xf32, #tpu.memory_space<vmem>>, %arg7: memref<8x128xf32, #tpu.memory_space<vmem>>, %arg8: memref<8x128xf32, #tpu.memory_space<vmem>>) attributes {dimension_semantics = [#tpu.dimension_semantics<parallel>, #tpu.dimension_semantics<arbitrary>], iteration_bounds = array<i64: 2, 1>, scalar_prefetch = 0 : i64, scratch_operands = 1 : i64, tpu.core_type = #tpu.core_type<tc>, window_params = [{transform_indices = @transform_0, window_bounds = array<i64: 8, 32>}, {pipeline_mode = #tpu.pipeline_mode<synchronous>, transform_indices = @transform_1, window_bounds = array<i64: 32, 128>}, {pipeline_mode = #tpu.pipeline_mode<synchronous>, transform_indices = @transform_2, window_bounds = array<i64: 1, 128>}, {pipeline_mode = #tpu.pipeline_mode<synchronous>, transform_indices = @transform_3, window_bounds = array<i64: 128, 128>}, {pipeline_mode = #tpu.pipeline_mode<synchronous>, transform_indices = @transform_4, window_bounds = array<i64: 1, 128>}, {transform_indices = @transform_5, window_bounds = array<i64: 8, 128>}]} {
    %c0_i32 = arith.constant 0 : i32
    %0 = arith.cmpi eq, %arg1, %c0_i32 : i32
    %1 = arith.extui %0 : i1 to i32
    %c0_i32_0 = arith.constant 0 : i32
    %2 = arith.cmpi ne, %1, %c0_i32_0 : i32
    scf.if %2 {
      %cst_16 = arith.constant 0.000000e+00 : f32
      %19 = vector.broadcast %cst_16 : f32 to vector<8x128xf32>
      %c0_17 = arith.constant 0 : index
      %c0_18 = arith.constant 0 : index
      %20 = vector.load %arg8[%c0_17, %c0_18] : memref<8x128xf32, #tpu.memory_space<vmem>>, vector<8x128xf32>
      tpu.vector_store %arg8[%c0_17, %c0_18], %19 {strides = array<i32>} : memref<8x128xf32, #tpu.memory_space<vmem>>, vector<8x128xf32>,
    } else {
    }
    %c0 = arith.constant 0 : index
    %c0_1 = arith.constant 0 : index
    %3 = vector.load %arg2[%c0, %c0_1] : memref<8x32xf32, #tpu.memory_space<vmem>>, vector<8x32xf32>
    %c0_2 = arith.constant 0 : index
    %c0_3 = arith.constant 0 : index
    %4 = vector.load %arg3[%c0_2, %c0_3] : memref<32x128xf32, #tpu.memory_space<vmem>>, vector<32x128xf32>
    %cst = arith.constant dense<0.000000e+00> : vector<8x128xf32>
    %5 = tpu.matmul %3, %4, %cst {dimension_numbers = #tpu.dot_dimension_numbers<[1], [0], [0], [1], [0, 0, 1, 1], [], []>} : vector<8x32xf32>, vector<32x128xf32>, vector<8x128xf32> -> vector<8x128xf32>
    %c0_4 = arith.constant 0 : index
    %c0_5 = arith.constant 0 : index
    %6 = vector.load %arg4[%c0_4, %c0_5] : memref<1x128xf32, #tpu.memory_space<vmem>>, vector<1x128xf32>
    %7 = vector.broadcast %6 : vector<1x128xf32> to vector<8x128xf32>
    %8 = arith.addf %5, %7 : vector<8x128xf32>
    %cst_6 = arith.constant 0.000000e+00 : f32
    %9 = vector.broadcast %cst_6 : f32 to vector<8x128xf32>
    %10 = arith.maximumf %8, %9 : vector<8x128xf32>
    %c0_7 = arith.constant 0 : index
    %c0_8 = arith.constant 0 : index
    %11 = vector.load %arg8[%c0_7, %c0_8] : memref<8x128xf32, #tpu.memory_space<vmem>>, vector<8x128xf32>
    %c0_9 = arith.constant 0 : index
    %c0_10 = arith.constant 0 : index
    %12 = vector.load %arg5[%c0_9, %c0_10] : memref<128x128xf32, #tpu.memory_space<vmem>>, vector<128x128xf32>
    %cst_11 = arith.constant dense<0.000000e+00> : vector<8x128xf32>
    %13 = tpu.matmul %10, %12, %cst_11 {dimension_numbers = #tpu.dot_dimension_numbers<[1], [0], [0], [1], [0, 0, 1, 1], [], []>} : vector<8x128xf32>, vector<128x128xf32>, vector<8x128xf32> -> vector<8x128xf32>
    %14 = arith.addf %11, %13 : vector<8x128xf32>
    %c0_12 = arith.constant 0 : index
    %c0_13 = arith.constant 0 : index
    %15 = vector.load %arg8[%c0_12, %c0_13] : memref<8x128xf32, #tpu.memory_space<vmem>>, vector<8x128xf32>
    tpu.vector_store %arg8[%c0_12, %c0_13], %14 {strides = array<i32>} : memref<8x128xf32, #tpu.memory_space<vmem>>, vector<8x128xf32>,
    %c0_i32_14 = arith.constant 0 : i32
    %16 = arith.cmpi eq, %arg1, %c0_i32_14 : i32
    %17 = arith.extui %16 : i1 to i32
    %c0_i32_15 = arith.constant 0 : i32
    %18 = arith.cmpi ne, %17, %c0_i32_15 : i32
    scf.if %18 {
      %c0_16 = arith.constant 0 : index
      %c0_17 = arith.constant 0 : index
      %19 = vector.load %arg8[%c0_16, %c0_17] : memref<8x128xf32, #tpu.memory_space<vmem>>, vector<8x128xf32>
      %c0_18 = arith.constant 0 : index
      %c0_19 = arith.constant 0 : index
      %20 = vector.load %arg6[%c0_18, %c0_19] : memref<1x128xf32, #tpu.memory_space<vmem>>, vector<1x128xf32>
      %21 = vector.broadcast %20 : vector<1x128xf32> to vector<8x128xf32>
      %22 = arith.addf %19, %21 : vector<8x128xf32>
      %c0_20 = arith.constant 0 : index
      %c0_21 = arith.constant 0 : index
      %23 = vector.load %arg7[%c0_20, %c0_21] : memref<8x128xf32, #tpu.memory_space<vmem>>, vector<8x128xf32>
      tpu.vector_store %arg7[%c0_20, %c0_21], %22 {strides = array<i32>} : memref<8x128xf32, #tpu.memory_space<vmem>>, vector<8x128xf32>,
    } else {
    }
    return
  }
  func.func @transform_0(%arg0: i32, %arg1: i32) -> (i32, i32) {
    %c0_i32 = arith.constant 0 : i32
    %c0_i32_0 = arith.constant 0 : i32
    return %arg0, %c0_i32 : i32, i32
  }
  func.func @transform_1(%arg0: i32, %arg1: i32) -> (i32, i32) {
    %c0_i32 = arith.constant 0 : i32
    %c0_i32_0 = arith.constant 0 : i32
    return %c0_i32, %arg1 : i32, i32
  }
  func.func @transform_2(%arg0: i32, %arg1: i32) -> (i32, i32) {
    %c0_i32 = arith.constant 0 : i32
    %c0_i32_0 = arith.constant 0 : i32
    return %c0_i32, %arg1 : i32, i32
  }
  func.func @transform_3(%arg0: i32, %arg1: i32) -> (i32, i32) {
    %c0_i32 = arith.constant 0 : i32
    %c0_i32_0 = arith.constant 0 : i32
    return %arg1, %c0_i32 : i32, i32
  }
  func.func @transform_4(%arg0: i32, %arg1: i32) -> (i32, i32) {
    %c0_i32 = arith.constant 0 : i32
    %c0_i32_0 = arith.constant 0 : i32
    %c0_i32_1 = arith.constant 0 : i32
    return %c0_i32, %c0_i32_0 : i32, i32
  }
  func.func @transform_5(%arg0: i32, %arg1: i32) -> (i32, i32) {
    %c0_i32 = arith.constant 0 : i32
    %c0_i32_0 = arith.constant 0 : i32
    return %arg0, %c0_i32 : i32, i32
  }
}

</mosaic_0001>

<llo_original>
// kernel: tpu_custom_call.1
$region0: #{tpu_custom_call.1}
  #allocation0 [shape = 'u32[]', space=smem, size = 0x4, offset = 0x4, fixed_abs, tag = 'smem constant byte address 0x4 - core index']
  #allocation1 [shape = 'u32[72,128]{1,0:T(1,128)}', space=vmem, size = 0x9000, scoped, tag = 'internal scratch']
  #allocation2 [shape = 'f32[8,128]{1,0:T(8,128)}', space=vmem, size = 0x1000, scoped, tag = 'scratch operand']
  %s0 = inlined_call_operand.hbm [shape: f32[16,32], index: 0, kind: input, shape index: {}]
  %s1 = inlined_call_operand.hbm [shape: f32[32,128], index: 1, kind: input, shape index: {}]
  %s2 = inlined_call_operand.vmem [shape: f32[1,128], index: 2, kind: input, shape index: {}]
  %s3 = inlined_call_operand.hbm [shape: f32[128,128], index: 3, kind: input, shape index: {}]
  %s4 = inlined_call_operand.vmem [shape: f32[1,128], index: 4, kind: input, shape index: {}]
  %s5 = inlined_call_operand.hbm [shape: f32[16,128], index: 5, kind: output, shape index: {}]
  %s6 = sld [smem:[#allocation0]]
  $region73: #{tpu_custom_call.1} parent=0
    _
  %s8 = ssub.s32 1, %s6
  %s9 = scalar_select 0, %s8, %s6
  $region1: #{tpu_custom_call.1} parent=0
    #allocation3 [shape = 'u8[8192]{0}', space=vmem, size = 0x2000, scoped, tag = 'input window, operand 0']
    #allocation4 [shape = 's32[2]{0}', space=sflag, size = 0x8, scoped, tag = 'scoped memory for tpu_custom_call.1']
    #allocation5 [shape = 's32[2]{0}', space=sflag, size = 0x8, scoped, tag = 'scoped memory for tpu_custom_call.1']
    #allocation6 [shape = 'u8[16384]{0}', space=vmem, size = 0x4000, scoped, tag = 'input window, operand 1, single buffered']
    #allocation7 [shape = 's32[1]{0}', space=sflag, size = 0x4, scoped, tag = 'scoped memory for tpu_custom_call.1']
    #allocation8 [shape = 'u8[65536]{0}', space=vmem, size = 0x10000, scoped, tag = 'input window, operand 3, single buffered']
    #allocation9 [shape = 'u8[8192]{0}', space=vmem, size = 0x2000, scoped, tag = 'output window, operand 0']
    %10 = vsyncpa [#allocation4], 0
    %s11 = scalar_lea.sflag [#allocation4], 1
    %12 = vsyncpa %s11, 0
    %13 = vsyncpa [#allocation7], 0
    %14 = vsyncpa [#allocation5], 0
    %s15 = scalar_lea.sflag [#allocation5], 1
    %16 = vsyncpa %s15, 0
    loop: start=0, step=1, limit=4
    $region2: #{tpu_custom_call.1} parent=1 // loop_pre_header
      _
    $region3: #{tpu_custom_call.1} parent=1 // loop_header
      %s18 = sphi 0, %s22
      %p19 = scmp.ge.s32.totalorder %s18, 4
      %s25 = sphi 0, %s37
      %s26 = sphi 0, %s33
      %s27 = sphi 0, %s25
      %s28 = sphi 0, %s26
      %s29 = sphi 0, %s27
      %s30 = sphi 0, %s28
      %s40 = sphi 0, %s42
      %s43 = sphi 0, %s40
      %s44 = sphi 0, %s43
      %s60 = sphi 0, %s44
      %s66 = sphi 0, %s68
      %s69 = sphi 0, %s66
      %s70 = sphi 0, %s69
      %s86 = sphi 0, %s70
      %s92 = sphi 0, %s94
      %s95 = sphi 0, %s92
      %s96 = sphi 0, %s95
      %s112 = sphi 0, %s96
      %s118 = sphi 0, %s120
      %s121 = sphi 0, %s118
      %s122 = sphi 0, %s121
      %s138 = sphi 0, %s122
      %s142 = sphi 0, %s142
      %s144 = sphi 0, %s142
      %s145 = sphi 0, %s144
      %s159 = sphi 0, %s145
      %s165 = sphi 0, %s167
      %s168 = sphi 0, %s165
      %s169 = sphi 0, %s168
      %s185 = sphi 0, %s169
    $region4: #{tpu_custom_call.1} parent=1 // loop_header_branch
      %21 = sbr.rel (%p19) target = $region8
    $region5: #{tpu_custom_call.1} parent=1 // loop_body
      %s23 = ssub.s32 %s18, 1
      %s24 = ssub.s32 %s18, 2
      %s31 = sadd.s32 1, %s26
      %p32 = scmp.ge.s32.totalorder %s31, 1
      %s33 = scalar_select %p32, 0, %s31
      %s34 = sadd.s32 1, %s25
      %s35 = scalar_select %p32, %s34, %s25
      %p36 = scmp.ge.s32.totalorder %s35, 2
      %s37 = scalar_select %p36, 0, %s35
      %s38 = ssub.s32 %s25, %s37
      %p39 = scmp.eq.s32.totalorder %s38, 0
      %s41 = sadd.s32 %s40, 1
      %s42 = scalar_select %p39, %s40, %s41
      %p45 = pneg %p39
      %p46 = scmp.eq.s32.totalorder %s18, 1
      %p47 = por %p45, %p46
      %p48 = scmp.ne.s32.totalorder %s40, %s43
      %p49 = scmp.eq.s32.totalorder %s18, 0
      %p50 = por %p48, %p49
      %p51 = scmp.ne.s32.totalorder %s40, %s43
      %p52 = scmp.eq.s32.totalorder %s23, 1
      %p53 = por %p51, %p52
      %p54 = scmp.ne.s32.totalorder %s43, %s44
      %p55 = scmp.eq.s32.totalorder %s23, 0
      %p56 = por %p54, %p55
      %p57 = scmp.ne.s32.totalorder %s43, %s44
      %p58 = scmp.eq.s32.totalorder %s24, 1
      %p59 = por %p57, %p58
      %p61 = scmp.ne.s32.totalorder %s44, %s60
      %p62 = scmp.eq.s32.totalorder %s24, 0
      %p63 = por %p61, %p62
      %s64 = ssub.s32 %s26, %s33
      %p65 = scmp.eq.s32.totalorder %s64, 0
      %s67 = sadd.s32 %s66, 1
      %s68 = scalar_select %p65, %s66, %s67
      %p71 = pneg %p65
      %p72 = scmp.eq.s32.totalorder %s18, 1
      %p73 = por %p71, %p72
      %p74 = scmp.ne.s32.totalorder %s66, %s69
      %p75 = scmp.eq.s32.totalorder %s18, 0
      %p76 = por %p74, %p75
      %p77 = scmp.ne.s32.totalorder %s66, %s69
      %p78 = scmp.eq.s32.totalorder %s23, 1
      %p79 = por %p77, %p78
      %p80 = scmp.ne.s32.totalorder %s69, %s70
      %p81 = scmp.eq.s32.totalorder %s23, 0
      %p82 = por %p80, %p81
      %p83 = scmp.ne.s32.totalorder %s69, %s70
      %p84 = scmp.eq.s32.totalorder %s24, 1
      %p85 = por %p83, %p84
      %p87 = scmp.ne.s32.totalorder %s70, %s86
      %p88 = scmp.eq.s32.totalorder %s24, 0
      %p89 = por %p87, %p88
      %s90 = ssub.s32 %s26, %s33
      %p91 = scmp.eq.s32.totalorder %s90, 0
      %s93 = sadd.s32 %s92, 1
      %s94 = scalar_select %p91, %s92, %s93
      %p97 = pneg %p91
      %p98 = scmp.eq.s32.totalorder %s18, 1
      %p99 = por %p97, %p98
      %p100 = scmp.ne.s32.totalorder %s92, %s95
      %p101 = scmp.eq.s32.totalorder %s18, 0
      %p102 = por %p100, %p101
      %p103 = scmp.ne.s32.totalorder %s92, %s95
      %p104 = scmp.eq.s32.totalorder %s23, 1
      %p105 = por %p103, %p104
      %p106 = scmp.ne.s32.totalorder %s95, %s96
      %p107 = scmp.eq.s32.totalorder %s23, 0
      %p108 = por %p106, %p107
      %p109 = scmp.ne.s32.totalorder %s95, %s96
      %p110 = scmp.eq.s32.totalorder %s24, 1
      %p111 = por %p109, %p110
      %p113 = scmp.ne.s32.totalorder %s96, %s112
      %p114 = scmp.eq.s32.totalorder %s24, 0
      %p115 = por %p113, %p114
      %s116 = ssub.s32 %s26, %s33
      %p117 = scmp.eq.s32.totalorder %s116, 0
      %s119 = sadd.s32 %s118, 1
      %s120 = scalar_select %p117, %s118, %s119
      %p123 = pneg %p117
      %p124 = scmp.eq.s32.totalorder %s18, 1
      %p125 = por %p123, %p124
      %p126 = scmp.ne.s32.totalorder %s118, %s121
      %p127 = scmp.eq.s32.totalorder %s18, 0
      %p128 = por %p126, %p127
      %p129 = scmp.ne.s32.totalorder %s118, %s121
      %p130 = scmp.eq.s32.totalorder %s23, 1
      %p131 = por %p129, %p130
      %p132 = scmp.ne.s32.totalorder %s121, %s122
      %p133 = scmp.eq.s32.totalorder %s23, 0
      %p134 = por %p132, %p133
      %p135 = scmp.ne.s32.totalorder %s121, %s122
      %p136 = scmp.eq.s32.totalorder %s24, 1
      %p137 = por %p135, %p136
      %p139 = scmp.ne.s32.totalorder %s122, %s138
      %p140 = scmp.eq.s32.totalorder %s24, 0
      %p141 = por %p139, %p140
      %s143 = sadd.s32 %s142, 1
      %p146 = scmp.eq.s32.totalorder %s18, 1
      %p147 = scmp.ne.s32.totalorder %s142, %s144
      %p148 = scmp.eq.s32.totalorder %s18, 0
      %p149 = por %p147, %p148
      %p150 = scmp.ne.s32.totalorder %s142, %s144
      %p151 = scmp.eq.s32.totalorder %s23, 1
      %p152 = por %p150, %p151
      %p153 = scmp.ne.s32.totalorder %s144, %s145
      %p154 = scmp.eq.s32.totalorder %s23, 0
      %p155 = por %p153, %p154
      %p156 = scmp.ne.s32.totalorder %s144, %s145
      %p157 = scmp.eq.s32.totalorder %s24, 1
      %p158 = por %p156, %p157
      %p160 = scmp.ne.s32.totalorder %s145, %s159
      %p161 = scmp.eq.s32.totalorder %s24, 0
      %p162 = por %p160, %p161
      %s163 = ssub.s32 %s25, %s37
      %p164 = scmp.eq.s32.totalorder %s163, 0
      %s166 = sadd.s32 %s165, 1
      %s167 = scalar_select %p164, %s165, %s166
      %p170 = pneg %p164
      %p171 = scmp.eq.s32.totalorder %s18, 1
      %p172 = por %p170, %p171
      %p173 = scmp.ne.s32.totalorder %s165, %s168
      %p174 = scmp.eq.s32.totalorder %s18, 0
      %p175 = por %p173, %p174
      %p176 = scmp.ne.s32.totalorder %s165, %s168
      %p177 = scmp.eq.s32.totalorder %s23, 1
      %p178 = por %p176, %p177
      %p179 = scmp.ne.s32.totalorder %s168, %s169
      %p180 = scmp.eq.s32.totalorder %s23, 0
      %p181 = por %p179, %p180
      %p182 = scmp.ne.s32.totalorder %s168, %s169
      %p183 = scmp.eq.s32.totalorder %s24, 1
      %p184 = por %p182, %p183
      %p186 = scmp.ne.s32.totalorder %s169, %s185
      %p187 = scmp.eq.s32.totalorder %s24, 0
      %p188 = por %p186, %p187
      %p189 = scmp.le.s32.totalorder 1, %s18
      %p190 = scmp.lt.s32.totalorder %s18, 3
      %p191 = pnand %p189, %p190
      %p192 = pneg %p191
      // Predicated region
      $region9: #{tpu_custom_call.1} parent=5 // pred_check
        _
      $region10: #{tpu_custom_call.1} parent=5 // pred_check_branch
        %194 = sbr.rel (%p191) target = $region12
      $region11: #{tpu_custom_call.1} parent=5 // pred_region
        %s195 = ssub.s32 %s18, 1
        // Predicated region
        $region13: #{tpu_custom_call.1} parent=11 // pred_check
          %p196 = pneg %p82
        $region14: #{tpu_custom_call.1} parent=11 // pred_check_branch
          %198 = sbr.rel (%p196) target = $region16
        $region15: #{tpu_custom_call.1} parent=11 // pred_region
          %200 = vsyncadd [#allocation7], 0
          %s201 = smul.addr %s28, 8
          %s202 = scalar_lea.hbm %s1, %s201
          %s203 = sshll.u32 %s202, 4
          %s204 = int_to_ptr.hbm [resolvable:$true] %s203
          %s205 = sshll.u32 [#allocation6], 4
          %s206 = int_to_ptr.vmem [resolvable:$true] %s205
          %211 = dma.hbm_to_vmem [thread:$0]  %s204, 512, %s206, [#allocation7], 128, 128, 8
        $region16: #{tpu_custom_call.1} parent=11 // pred_fallthru
          _
        // Predicated region
        $region17: #{tpu_custom_call.1} parent=11 // pred_check
          %p212 = pneg %p108
        $region18: #{tpu_custom_call.1} parent=11 // pred_check_branch
          %214 = sbr.rel (%p212) target = $region20
        $region19: #{tpu_custom_call.1} parent=11 // pred_region
          %p215 = scmp.lt.s32.totalorder %s28, 0
          %s216 = scalar_select %p215, %s28, 0
          %s217 = scalar_lea.vmem %s2, %s216
        $region20: #{tpu_custom_call.1} parent=11 // pred_fallthru
          _
        // Predicated region
        $region21: #{tpu_custom_call.1} parent=11 // pred_check
          %p218 = pneg %p134
        $region22: #{tpu_custom_call.1} parent=11 // pred_check_branch
          %220 = sbr.rel (%p218) target = $region24
        $region23: #{tpu_custom_call.1} parent=11 // pred_region
          %s221 = smul.u32 16, %s28
          %223 = vsyncadd [#allocation7], 0
          %s224 = smul.addr %s221, 8
          %s225 = scalar_lea.hbm %s3, %s224
          %s226 = sshll.u32 %s225, 4
          %s227 = int_to_ptr.hbm [resolvable:$true] %s226
          %s228 = sshll.u32 [#allocation8], 4
          %s229 = int_to_ptr.vmem [resolvable:$true] %s228
          %234 = dma.hbm_to_vmem [thread:$0]  %s227, 2048, %s229, [#allocation7], 128, 128, 8
        $region24: #{tpu_custom_call.1} parent=11 // pred_fallthru
          _
        // Predicated region
        $region25: #{tpu_custom_call.1} parent=11 // pred_check
          %p235 = pneg %p155
        $region26: #{tpu_custom_call.1} parent=11 // pred_check_branch
          %237 = sbr.rel (%p235) target = $region28
        $region27: #{tpu_custom_call.1} parent=11 // pred_region
          _
        $region28: #{tpu_custom_call.1} parent=11 // pred_fallthru
          _
      $region12: #{tpu_custom_call.1} parent=5 // pred_fallthru
        _
      %p238 = scmp.lt.s32.totalorder %s18, 2
      // Predicated region
      $region29: #{tpu_custom_call.1} parent=5 // pred_check
        %p239 = pneg %p238
      $region30: #{tpu_custom_call.1} parent=5 // pred_check_branch
        %241 = sbr.rel (%p239) target = $region32
      $region31: #{tpu_custom_call.1} parent=5 // pred_region
        // Predicated region
        $region33: #{tpu_custom_call.1} parent=31 // pred_check
          %p242 = pneg %p50
        $region34: #{tpu_custom_call.1} parent=31 // pred_check_branch
          %244 = sbr.rel (%p242) target = $region36
        $region35: #{tpu_custom_call.1} parent=31 // pred_region
          %s245 = sand.u32 %s40, 1
          %s246 = scalar_lea.sflag [#allocation4], %s245
          %s247 = sand.u32 %s40, 1
          %s248 = smul.addr %s247, 8
          %s249 = scalar_lea.vmem [#allocation3], %s248
          %251 = vsyncadd %s246, 0
          %s252 = smul.addr %s25, 8
          %s253 = scalar_lea.hbm %s0, %s252
          %s255 = sshll.u32 %s253, 4
          %s256 = int_to_ptr.hbm [resolvable:$true] %s255
          %s257 = sshll.u32 %s249, 4
          %s258 = int_to_ptr.vmem [resolvable:$true] %s257
          %260 = dma.hbm_to_vmem [thread:$0]  %s256, 128, %s258, %s246
        $region36: #{tpu_custom_call.1} parent=31 // pred_fallthru
          _
      $region32: #{tpu_custom_call.1} parent=5 // pred_fallthru
        _
      %p261 = scmp.le.s32.totalorder 1, %s18
      %p262 = scmp.lt.s32.totalorder %s18, 3
      %p263 = pnand %p261, %p262
      %p264 = pneg %p263
      // Predicated region
      $region37: #{tpu_custom_call.1} parent=5 // pred_check
        _
      $region38: #{tpu_custom_call.1} parent=5 // pred_check_branch
        %266 = sbr.rel (%p263) target = $region40
      $region39: #{tpu_custom_call.1} parent=5 // pred_region
        %s267 = ssub.s32 %s18, 1
        %s268 = sand.u32 %s43, 1
        %s269 = scalar_lea.sflag [#allocation4], %s268
        %s270 = sand.u32 %s43, 1
        %s271 = smul.addr %s270, 8
        %s272 = scalar_lea.vmem [#allocation3], %s271
        // Predicated region
        $region41: #{tpu_custom_call.1} parent=39 // pred_check
          %p273 = pneg %p56
        $region42: #{tpu_custom_call.1} parent=39 // pred_check_branch
          %275 = sbr.rel (%p273) target = $region44
        $region43: #{tpu_custom_call.1} parent=39 // pred_region
          %277 = dma.done %s269, 128
        $region44: #{tpu_custom_call.1} parent=39 // pred_fallthru
          _
        // Predicated region
        $region45: #{tpu_custom_call.1} parent=39 // pred_check
          %p278 = pneg %p82
        $region46: #{tpu_custom_call.1} parent=39 // pred_check_branch
          %280 = sbr.rel (%p278) target = $region48
        $region47: #{tpu_custom_call.1} parent=39 // pred_region
          %282 = dma.done [#allocation7], 512
        $region48: #{tpu_custom_call.1} parent=39 // pred_fallthru
          _
        // Predicated region
        $region49: #{tpu_custom_call.1} parent=39 // pred_check
          %p283 = pneg %p134
        $region50: #{tpu_custom_call.1} parent=39 // pred_check_branch
          %285 = sbr.rel (%p283) target = $region52
        $region51: #{tpu_custom_call.1} parent=39 // pred_region
          %287 = dma.done [#allocation7], 2048
        $region52: #{tpu_custom_call.1} parent=39 // pred_fallthru
          _
        %s288 = sand.u32 %s43, 1
        %s289 = scalar_lea.sflag [#allocation4], %s288
        %s290 = sand.u32 %s43, 1
        %s291 = smul.addr %s290, 8
        %s292 = scalar_lea.vmem [#allocation3], %s291
        %p293 = pneg %p56
        %p294 = pneg %p53
        %p295 = pneg %p82
        %p296 = pneg %p79
        %p297 = scmp.lt.s32.totalorder %s28, 0
        %s298 = scalar_select %p297, %s28, 0
        %s299 = scalar_lea.vmem %s2, %s298
        %p300 = pneg %p108
        %p301 = pneg %p105
        %p302 = pneg %p134
        %p303 = pneg %p131
        %p304 = pneg %p155
        %p305 = pneg %p152
        %p306 = pneg %p181
        %p307 = pneg %p178
        %s308 = sand.u32 %s168, 1
        %s309 = scalar_lea.sflag [#allocation5], %s308
        %s310 = sand.u32 %s168, 1
        %s311 = smul.addr %s310, 8
        %s312 = scalar_lea.vmem [#allocation9], %s311
        %p313 = scmp.lt.s32.totalorder %s28, 0
        %s314 = scalar_select %p313, %s28, 0
        %s315 = scalar_lea.vmem %s2, %s314
        %s316 = smul.u32 16, %s28
        %p317 = scmp.eq.s32.totalorder %s28, 0
        // Predicated region
        $region53: #{tpu_custom_call.1} parent=39 // pred_check
          %p318 = pneg %p317
        $region54: #{tpu_custom_call.1} parent=39 // pred_check_branch
          %320 = sbr.rel (%p318) target = $region56
        $region55: #{tpu_custom_call.1} parent=39 // pred_region
          %321 = vst [vmem:[#allocation2] sm:$0xff] 0.0
        $region56: #{tpu_custom_call.1} parent=39 // pred_fallthru
          _
        %v322 = vld [vmem:[%s272] sm:$0xff]
        %v323 = vld [vmem:[#allocation6] sm:$0xff]
        %v324 = vld [vmem:[#allocation6 + $0x8] sm:$0xff]
        %v325 = vld [vmem:[#allocation6 + $0x10] sm:$0xff]
        %v326 = vld [vmem:[#allocation6 + $0x18] sm:$0xff]
        %v327 = vld [vmem:[%s315] sm:$0x1]
        %v329 = vperm.slane %v327, 0
        %vm331 = vcmask 261120
        %v333 = vsel %vm331, %v322, 0
        %335 = vmatpush.msra.mxu0 0.0
        %336 = vmatpush.msra.mxu0 0.0
        %337 = vmatpush.msra.mxu0 0.0
        %338 = vmatpush.msra.mxu0 0.0
        %339 = vmatpush.msra.mxu0 0.0
        %340 = vmatpush.msra.mxu0 0.0
        %341 = vmatpush.msra.mxu0 0.0
        %342 = vmatpush.msra.mxu0 0.0
        %343 = vmatpush.msra.mxu0 0.0
        %344 = vmatpush.msra.mxu0 0.0
        %345 = vmatpush.msra.mxu0 0.0
        %346 = vmatpush.msra.mxu0 0.0
        %347 = vmatpush.msra.mxu0 %v326
        %348 = vmatpush.msra.mxu0 %v325
        %349 = vmatpush.msra.mxu0 %v324
        %350 = vmatpush.msra.mxu0 %v323
        %351 = vmatmul.f32.gmra.mxu0 %v333
        %v352 = vpop.f32.mrf.mxu0
        %v353 = vadd.f32 %v329, %v352
        %354 = vdwg.mxu0
        %v355 = vmax.f32 %v353, 0.0
        %v356 = vld [vmem:[#allocation2] sm:$0xff]
        %v357 = vld [vmem:[#allocation8] sm:$0xff]
        %v358 = vld [vmem:[#allocation8 + $0x8] sm:$0xff]
        %v359 = vld [vmem:[#allocation8 + $0x10] sm:$0xff]
        %v360 = vld [vmem:[#allocation8 + $0x18] sm:$0xff]
        %v361 = vld [vmem:[#allocation8 + $0x20] sm:$0xff]
        %v362 = vld [vmem:[#allocation8 + $0x28] sm:$0xff]
        %v363 = vld [vmem:[#allocation8 + $0x30] sm:$0xff]
        %v364 = vld [vmem:[#allocation8 + $0x38] sm:$0xff]
        %v365 = vld [vmem:[#allocation8 + $0x40] sm:$0xff]
        %v366 = vld [vmem:[#allocation8 + $0x48] sm:$0xff]
        %v367 = vld [vmem:[#allocation8 + $0x50] sm:$0xff]
        %v368 = vld [vmem:[#allocation8 + $0x58] sm:$0xff]
        %v369 = vld [vmem:[#allocation8 + $0x60] sm:$0xff]
        %v370 = vld [vmem:[#allocation8 + $0x68] sm:$0xff]
        %v371 = vld [vmem:[#allocation8 + $0x70] sm:$0xff]
        %v372 = vld [vmem:[#allocation8 + $0x78] sm:$0xff]
        %373 = vmatpush.msra.mxu0 %v372
        %374 = vmatpush.msra.mxu0 %v371
        %375 = vmatpush.msra.mxu0 %v370
        %376 = vmatpush.msra.mxu0 %v369
        %377 = vmatpush.msra.mxu0 %v368
        %378 = vmatpush.msra.mxu0 %v367
        %379 = vmatpush.msra.mxu0 %v366
        %380 = vmatpush.msra.mxu0 %v365
        %381 = vmatpush.msra.mxu0 %v364
        %382 = vmatpush.msra.mxu0 %v363
        %383 = vmatpush.msra.mxu0 %v362
        %384 = vmatpush.msra.mxu0 %v361
        %385 = vmatpush.msra.mxu0 %v360
        %386 = vmatpush.msra.mxu0 %v359
        %387 = vmatpush.msra.mxu0 %v358
        %388 = vmatpush.msra.mxu0 %v357
        %389 = vmatmul.f32.gmra.mxu0 %v355
        %v390 = vpop.f32.mrf.mxu0
        %v391 = vadd.f32 0.0, %v390
        %392 = vdwg.mxu0
        %v393 = vadd.f32 %v356, %v391
        %394 = vst [vmem:[#allocation2] sm:$0xff] %v393
        // Predicated region
        $region57: #{tpu_custom_call.1} parent=39 // pred_check
          %p395 = pneg %p317
        $region58: #{tpu_custom_call.1} parent=39 // pred_check_branch
          %397 = sbr.rel (%p395) target = $region60
        $region59: #{tpu_custom_call.1} parent=39 // pred_region
          %v398 = vld [vmem:[#allocation2] sm:$0xff]
          %v399 = vld [vmem:[%s4] sm:$0x1]
          %v401 = vperm.slane %v399, 0
          %v403 = vadd.f32 %v398, %v401
          %404 = vst [vmem:[%s312] sm:$0xff] %v403
        $region60: #{tpu_custom_call.1} parent=39 // pred_fallthru
          _
        %s405 = sand.u32 %s168, 1
        %s406 = scalar_lea.sflag [#allocation5], %s405
        %s407 = sand.u32 %s168, 1
        %s408 = smul.addr %s407, 8
        %s409 = scalar_lea.vmem [#allocation9], %s408
        // Predicated region
        $region61: #{tpu_custom_call.1} parent=39 // pred_check
          %p410 = pneg %p178
        $region62: #{tpu_custom_call.1} parent=39 // pred_check_branch
          %412 = sbr.rel (%p410) target = $region64
        $region63: #{tpu_custom_call.1} parent=39 // pred_region
          %414 = vsyncadd %s406, 0
          %s415 = smul.addr %s27, 8
          %s416 = scalar_lea.hbm %s5, %s415
          %s418 = sshll.u32 %s409, 4
          %s419 = int_to_ptr.vmem [resolvable:$true] %s418
          %s420 = sshll.u32 %s416, 4
          %s421 = int_to_ptr.hbm [resolvable:$true] %s420
          %423 = dma.vmem_to_hbm [thread:$0]  %s419, 128, %s421, %s406
        $region64: #{tpu_custom_call.1} parent=39 // pred_fallthru
          _
      $region40: #{tpu_custom_call.1} parent=5 // pred_fallthru
        _
      %p424 = scmp.le.s32.totalorder 2, %s18
      // Predicated region
      $region65: #{tpu_custom_call.1} parent=5 // pred_check
        %p425 = pneg %p424
      $region66: #{tpu_custom_call.1} parent=5 // pred_check_branch
        %427 = sbr.rel (%p425) target = $region68
      $region67: #{tpu_custom_call.1} parent=5 // pred_region
        %s428 = ssub.s32 %s18, 2
        // Predicated region
        $region69: #{tpu_custom_call.1} parent=67 // pred_check
          %p429 = pneg %p184
        $region70: #{tpu_custom_call.1} parent=67 // pred_check_branch
          %431 = sbr.rel (%p429) target = $region72
        $region71: #{tpu_custom_call.1} parent=67 // pred_region
          %s432 = sand.u32 %s169, 1
          %s433 = scalar_lea.sflag [#allocation5], %s432
          %s434 = sand.u32 %s169, 1
          %s435 = smul.addr %s434, 8
          %s436 = scalar_lea.vmem [#allocation9], %s435
          %438 = dma.done %s433, 128
        $region72: #{tpu_custom_call.1} parent=67 // pred_fallthru
          _
      $region68: #{tpu_custom_call.1} parent=5 // pred_fallthru
        _
    $region6: #{tpu_custom_call.1} parent=1 // loop_footer
      %s22 = sadd.s32 1, %s18
    $region7: #{tpu_custom_call.1} parent=1 // loop_footer_branch
      %17 = sbr.rel target = $region3
    $region8: #{tpu_custom_call.1} parent=1 // loop_exit
      _
    %439 = vsyncpa [#allocation4], 1
    %s440 = scalar_lea.sflag [#allocation4], 1
    %441 = vsyncpa %s440, 1
    %442 = vsyncpa [#allocation7], 1
    %443 = vsyncpa [#allocation5], 1
    %s444 = scalar_lea.sflag [#allocation5], 1
    %445 = vsyncpa %s444, 1

</llo_original>
